<compile_context>
chip_gen: v5e
topology: v5e:2x2
jax: 0.10.0
libtpu: 0.0.40
codegen_flags: <defaults>
</compile_context>

<pallas_src>
import functools

import jax
import jax.numpy as jnp
from jax.experimental import pallas as pl
from jax.experimental.pallas import tpu as pltpu


def _round_up(x, m):
    return ((x + m - 1) // m) * m


def _mlp_kernel(s_ref, a_ref, w1s_ref, w1a_ref, b1_ref, w2_ref, b2_ref,
                w3_ref, b3_ref, o_ref):
    s = s_ref[...]
    a = a_ref[...]
    # Layer 1: concat-free Linear(D+A -> H) + ReLU. f32 accumulation on the MXU,
    # bias-add / ReLU in f32 on the VPU (safe on v5e which has no bf16 VPU path).
    h1 = (jnp.dot(s, w1s_ref[...], preferred_element_type=jnp.float32)
          + jnp.dot(a, w1a_ref[...], preferred_element_type=jnp.float32)
          + b1_ref[...])
    h1 = jnp.maximum(h1, 0.0).astype(w2_ref.dtype)
    # Layer 2: Linear(H -> H) + ReLU
    h2 = jnp.dot(h1, w2_ref[...], preferred_element_type=jnp.float32) + b2_ref[...]
    h2 = jnp.maximum(h2, 0.0).astype(w3_ref.dtype)
    # Layer 3: Linear(H -> D)
    out = jnp.dot(h2, w3_ref[...], preferred_element_type=jnp.float32) + b3_ref[...]
    o_ref[...] = out.astype(o_ref.dtype)


@functools.partial(jax.jit, static_argnames=("compute_dtype", "block_rows"))
def transition_model_forward(s, a, params, *, compute_dtype=None, block_rows=8192):
    """Fused Pallas forward pass of TransitionModel.

    s: [B, D], a: [B, A]  ->  [B, D]
    params: dict with w1_s [D,H], w1_a [A,H], b1 [1,H], w2 [H,H], b2 [1,H],
            w3 [H,D], b3 [1,D]

    compute_dtype: optional (e.g. jnp.bfloat16 on v6e/v7x). Matmuls always
      accumulate in f32; biases are kept in f32.
    block_rows: batch-tile size (rows per grid step).

    NOTE: for very small B (a few hundred rows or less) plain XLA is faster than
    the pallas_call fixed overhead; amortize by stacking rollouts into one batch.
    """
    B, D = s.shape
    A = a.shape[1]
    out_dtype = s.dtype

    w1s, w1a = params["w1_s"], params["w1_a"]
    w2, w3 = params["w2"], params["w3"]
    # Biases stay f32 (added to the f32 accumulator).
    b1 = params["b1"].astype(jnp.float32)
    b2 = params["b2"].astype(jnp.float32)
    b3 = params["b3"].astype(jnp.float32)

    if compute_dtype is not None:
        s = s.astype(compute_dtype)
        a = a.astype(compute_dtype)
        w1s = w1s.astype(compute_dtype)
        w1a = w1a.astype(compute_dtype)
        w2 = w2.astype(compute_dtype)
        w3 = w3.astype(compute_dtype)

    H = w2.shape[0]

    # Batch tile: big enough to amortize per-step overhead, never larger than the
    # (sublane-rounded) batch. Partial trailing blocks are handled by Pallas masking
    # (rows are independent, so padded rows cannot contaminate valid outputs).
    tb = min(int(block_rows), _round_up(B, 8))
    grid = (pl.cdiv(B, tb),)

    batch_spec = lambda cols: pl.BlockSpec((tb, cols), lambda i: (i, 0))
    resident = lambda shape: pl.BlockSpec(shape, lambda i: (0, 0))

    return pl.pallas_call(
        _mlp_kernel,
        out_shape=jax.ShapeDtypeStruct((B, D), out_dtype),
        grid=grid,
        in_specs=[
            batch_spec(D),             # s tile
            batch_spec(A),             # a tile
            resident(w1s.shape), resident(w1a.shape), resident(b1.shape),
            resident(w2.shape), resident(b2.shape),
            resident(w3.shape), resident(b3.shape),
        ],
        out_specs=batch_spec(D),
        compiler_params=pltpu.CompilerParams(
            dimension_semantics=("parallel",),
            # Default scoped VMEM (32 MiB) is ample for tb<=8192 f32; raise
            # vmem_limit_bytes here only if block_rows is pushed toward 16K-32K.
        ),
    )(s, a, w1s, w1a, b1, w2, b2, w3, b3)


def init_params(key, state_dim, action_dim, hidden_size=64, dtype=jnp.float32):
    """Deterministic synthetic init (PyTorch-style uniform fan-in bounds).

    Layer-1 weight is stored pre-split (w1_s, w1_a) so the kernel never needs a
    concatenated [B, D+A] input buffer.
    """
    def linear(k, fan_in, fan_out):
        kw, kb = jax.random.split(k)
        bound = 1.0 / (fan_in ** 0.5)
        w = jax.random.uniform(kw, (fan_in, fan_out), dtype, -bound, bound)
        b = jax.random.uniform(kb, (1, fan_out), dtype, -bound, bound)
        return w, b

    k1, k2, k3 = jax.random.split(key, 3)
    w1, b1 = linear(k1, state_dim + action_dim, hidden_size)
    w2, b2 = linear(k2, hidden_size, hidden_size)
    w3, b3 = linear(k3, hidden_size, state_dim)
    return {
        "w1_s": w1[:state_dim], "w1_a": w1[state_dim:], "b1": b1,
        "w2": w2, "b2": b2,
        "w3": w3, "b3": b3,
    }


def _reference(s, a, params):
    # Pure-JAX reference mirroring the PyTorch forward (explicit concat).
    x = jnp.concatenate([s, a], axis=-1)
    w1 = jnp.concatenate([params["w1_s"], params["w1_a"]], axis=0)
    h1 = jnp.maximum(x @ w1 + params["b1"], 0.0)
    h2 = jnp.maximum(h1 @ params["w2"] + params["b2"], 0.0)
    return h2 @ params["w3"] + params["b3"]


if __name__ == "__main__":
    key = jax.random.PRNGKey(0)
    k_s, k_a, k_p, k_s2, k_a2 = jax.random.split(key, 5)

    batch = 8
    state_dim = 4
    action_dim = 2
    hidden_size = 64

    s = jax.random.normal(k_s, (batch, state_dim), jnp.float32)
    a = jax.random.normal(k_a, (batch, action_dim), jnp.float32)
    params = init_params(k_p, state_dim, action_dim, hidden_size)

    # --- f32 path, single block ---
    out = transition_model_forward(s, a, params)
    jax.block_until_ready(out)
    ref = _reference(s, a, params)
    assert out.shape == (batch, state_dim)
    assert jnp.allclose(out, ref, atol=1e-5, rtol=1e-5)

    # --- f32 path, multi-step grid with a partial trailing block ---
    big_b = 200
    s2 = jax.random.normal(k_s2, (big_b, state_dim), jnp.float32)
    a2 = jax.random.normal(k_a2, (big_b, action_dim), jnp.float32)
    out2 = transition_model_forward(s2, a2, params, block_rows=64)
    jax.block_until_ready(out2)
    ref2 = _reference(s2, a2, params)
    assert out2.shape == (big_b, state_dim)
    assert jnp.allclose(out2, ref2, atol=1e-5, rtol=1e-5)

    # --- bf16 compute path (f32 accumulation), loose tolerance ---
    out_bf16 = transition_model_forward(s, a, params, compute_dtype=jnp.bfloat16)
    jax.block_until_ready(out_bf16)
    assert out_bf16.shape == (batch, state_dim)
    assert jnp.allclose(out_bf16, ref, atol=1e-1, rtol=1e-1)

    print("KERNEL_OK")
</pallas_src>

<mosaic_0001>
module attributes {stable_mosaic.version = 11 : i64} {
  func.func @_mlp_kernel(%arg0: i32, %arg1: memref<8x4xf32, #tpu.memory_space<vmem>>, %arg2: memref<8x2xf32, #tpu.memory_space<vmem>>, %arg3: memref<4x64xf32, #tpu.memory_space<vmem>>, %arg4: memref<2x64xf32, #tpu.memory_space<vmem>>, %arg5: memref<1x64xf32, #tpu.memory_space<vmem>>, %arg6: memref<64x64xf32, #tpu.memory_space<vmem>>, %arg7: memref<1x64xf32, #tpu.memory_space<vmem>>, %arg8: memref<64x4xf32, #tpu.memory_space<vmem>>, %arg9: memref<1x4xf32, #tpu.memory_space<vmem>>, %arg10: memref<8x4xf32, #tpu.memory_space<vmem>>) attributes {dimension_semantics = [#tpu.dimension_semantics<parallel>], iteration_bounds = array<i64: 1>, scalar_prefetch = 0 : i64, scratch_operands = 0 : i64, tpu.core_type = #tpu.core_type<tc>, window_params = [{transform_indices = @transform_0, window_bounds = array<i64: 8, 4>}, {transform_indices = @transform_1, window_bounds = array<i64: 8, 2>}, {pipeline_mode = #tpu.pipeline_mode<synchronous>, transform_indices = @transform_2, window_bounds = array<i64: 4, 64>}, {pipeline_mode = #tpu.pipeline_mode<synchronous>, transform_indices = @transform_3, window_bounds = array<i64: 2, 64>}, {pipeline_mode = #tpu.pipeline_mode<synchronous>, transform_indices = @transform_4, window_bounds = array<i64: 1, 64>}, {pipeline_mode = #tpu.pipeline_mode<synchronous>, transform_indices = @transform_5, window_bounds = array<i64: 64, 64>}, {pipeline_mode = #tpu.pipeline_mode<synchronous>, transform_indices = @transform_6, window_bounds = array<i64: 1, 64>}, {pipeline_mode = #tpu.pipeline_mode<synchronous>, transform_indices = @transform_7, window_bounds = array<i64: 64, 4>}, {pipeline_mode = #tpu.pipeline_mode<synchronous>, transform_indices = @transform_8, window_bounds = array<i64: 1, 4>}, {transform_indices = @transform_9, window_bounds = array<i64: 8, 4>}]} {
    %c0 = arith.constant 0 : index
    %c0_0 = arith.constant 0 : index
    %0 = vector.load %arg1[%c0, %c0_0] : memref<8x4xf32, #tpu.memory_space<vmem>>, vector<8x4xf32>
    %c0_1 = arith.constant 0 : index
    %c0_2 = arith.constant 0 : index
    %1 = vector.load %arg2[%c0_1, %c0_2] : memref<8x2xf32, #tpu.memory_space<vmem>>, vector<8x2xf32>
    %c0_3 = arith.constant 0 : index
    %c0_4 = arith.constant 0 : index
    %2 = vector.load %arg3[%c0_3, %c0_4] : memref<4x64xf32, #tpu.memory_space<vmem>>, vector<4x64xf32>
    %cst = arith.constant dense<0.000000e+00> : vector<8x64xf32>
    %3 = tpu.matmul %0, %2, %cst {dimension_numbers = #tpu.dot_dimension_numbers<[1], [0], [0], [1], [0, 0, 1, 1], [], []>} : vector<8x4xf32>, vector<4x64xf32>, vector<8x64xf32> -> vector<8x64xf32>
    %c0_5 = arith.constant 0 : index
    %c0_6 = arith.constant 0 : index
    %4 = vector.load %arg4[%c0_5, %c0_6] : memref<2x64xf32, #tpu.memory_space<vmem>>, vector<2x64xf32>
    %cst_7 = arith.constant dense<0.000000e+00> : vector<8x64xf32>
    %5 = tpu.matmul %1, %4, %cst_7 {dimension_numbers = #tpu.dot_dimension_numbers<[1], [0], [0], [1], [0, 0, 1, 1], [], []>} : vector<8x2xf32>, vector<2x64xf32>, vector<8x64xf32> -> vector<8x64xf32>
    %6 = arith.addf %3, %5 : vector<8x64xf32>
    %c0_8 = arith.constant 0 : index
    %c0_9 = arith.constant 0 : index
    %7 = vector.load %arg5[%c0_8, %c0_9] : memref<1x64xf32, #tpu.memory_space<vmem>>, vector<1x64xf32>
    %8 = vector.broadcast %7 : vector<1x64xf32> to vector<8x64xf32>
    %9 = arith.addf %6, %8 : vector<8x64xf32>
    %cst_10 = arith.constant 0.000000e+00 : f32
    %10 = vector.broadcast %cst_10 : f32 to vector<8x64xf32>
    %11 = arith.maximumf %9, %10 : vector<8x64xf32>
    %c0_11 = arith.constant 0 : index
    %c0_12 = arith.constant 0 : index
    %12 = vector.load %arg6[%c0_11, %c0_12] : memref<64x64xf32, #tpu.memory_space<vmem>>, vector<64x64xf32>
    %cst_13 = arith.constant dense<0.000000e+00> : vector<8x64xf32>
    %13 = tpu.matmul %11, %12, %cst_13 {dimension_numbers = #tpu.dot_dimension_numbers<[1], [0], [0], [1], [0, 0, 1, 1], [], []>} : vector<8x64xf32>, vector<64x64xf32>, vector<8x64xf32> -> vector<8x64xf32>
    %c0_14 = arith.constant 0 : index
    %c0_15 = arith.constant 0 : index
    %14 = vector.load %arg7[%c0_14, %c0_15] : memref<1x64xf32, #tpu.memory_space<vmem>>, vector<1x64xf32>
    %15 = vector.broadcast %14 : vector<1x64xf32> to vector<8x64xf32>
    %16 = arith.addf %13, %15 : vector<8x64xf32>
    %cst_16 = arith.constant 0.000000e+00 : f32
    %17 = vector.broadcast %cst_16 : f32 to vector<8x64xf32>
    %18 = arith.maximumf %16, %17 : vector<8x64xf32>
    %c0_17 = arith.constant 0 : index
    %c0_18 = arith.constant 0 : index
    %19 = vector.load %arg8[%c0_17, %c0_18] : memref<64x4xf32, #tpu.memory_space<vmem>>, vector<64x4xf32>
    %cst_19 = arith.constant dense<0.000000e+00> : vector<8x4xf32>
    %20 = tpu.matmul %18, %19, %cst_19 {dimension_numbers = #tpu.dot_dimension_numbers<[1], [0], [0], [1], [0, 0, 1, 1], [], []>} : vector<8x64xf32>, vector<64x4xf32>, vector<8x4xf32> -> vector<8x4xf32>
    %c0_20 = arith.constant 0 : index
    %c0_21 = arith.constant 0 : index
    %21 = vector.load %arg9[%c0_20, %c0_21] : memref<1x4xf32, #tpu.memory_space<vmem>>, vector<1x4xf32>
    %22 = vector.broadcast %21 : vector<1x4xf32> to vector<8x4xf32>
    %23 = arith.addf %20, %22 : vector<8x4xf32>
    %c0_22 = arith.constant 0 : index
    %c0_23 = arith.constant 0 : index
    %24 = vector.load %arg10[%c0_22, %c0_23] : memref<8x4xf32, #tpu.memory_space<vmem>>, vector<8x4xf32>
    tpu.vector_store %arg10[%c0_22, %c0_23], %23 {strides = array<i32>} : memref<8x4xf32, #tpu.memory_space<vmem>>, vector<8x4xf32>,
    return
  }
  func.func @transform_0(%arg0: i32) -> (i32, i32) {
    %c0_i32 = arith.constant 0 : i32
    %c0_i32_0 = arith.constant 0 : i32
    return %arg0, %c0_i32 : i32, i32
  }
  func.func @transform_1(%arg0: i32) -> (i32, i32) {
    %c0_i32 = arith.constant 0 : i32
    %c0_i32_0 = arith.constant 0 : i32
    return %arg0, %c0_i32 : i32, i32
  }
  func.func @transform_2(%arg0: i32) -> (i32, i32) {
    %c0_i32 = arith.constant 0 : i32
    %c0_i32_0 = arith.constant 0 : i32
    %c0_i32_1 = arith.constant 0 : i32
    return %c0_i32, %c0_i32_0 : i32, i32
  }
  func.func @transform_3(%arg0: i32) -> (i32, i32) {
    %c0_i32 = arith.constant 0 : i32
    %c0_i32_0 = arith.constant 0 : i32
    %c0_i32_1 = arith.constant 0 : i32
    return %c0_i32, %c0_i32_0 : i32, i32
  }
  func.func @transform_4(%arg0: i32) -> (i32, i32) {
    %c0_i32 = arith.constant 0 : i32
    %c0_i32_0 = arith.constant 0 : i32
    %c0_i32_1 = arith.constant 0 : i32
    return %c0_i32, %c0_i32_0 : i32, i32
  }
  func.func @transform_5(%arg0: i32) -> (i32, i32) {
    %c0_i32 = arith.constant 0 : i32
    %c0_i32_0 = arith.constant 0 : i32
    %c0_i32_1 = arith.constant 0 : i32
    return %c0_i32, %c0_i32_0 : i32, i32
  }
  func.func @transform_6(%arg0: i32) -> (i32, i32) {
    %c0_i32 = arith.constant 0 : i32
    %c0_i32_0 = arith.constant 0 : i32
    %c0_i32_1 = arith.constant 0 : i32
    return %c0_i32, %c0_i32_0 : i32, i32
  }
  func.func @transform_7(%arg0: i32) -> (i32, i32) {
    %c0_i32 = arith.constant 0 : i32
    %c0_i32_0 = arith.constant 0 : i32
    %c0_i32_1 = arith.constant 0 : i32
    return %c0_i32, %c0_i32_0 : i32, i32
  }
  func.func @transform_8(%arg0: i32) -> (i32, i32) {
    %c0_i32 = arith.constant 0 : i32
    %c0_i32_0 = arith.constant 0 : i32
    %c0_i32_1 = arith.constant 0 : i32
    return %c0_i32, %c0_i32_0 : i32, i32
  }
  func.func @transform_9(%arg0: i32) -> (i32, i32) {
    %c0_i32 = arith.constant 0 : i32
    %c0_i32_0 = arith.constant 0 : i32
    return %arg0, %c0_i32 : i32, i32
  }
}

</mosaic_0001>

<llo_original>
// kernel: transition_model_forward.1
$region0: #{transition_model_forward.1}
  #allocation0 [shape = 'u32[]', space=smem, size = 0x4, offset = 0x4, fixed_abs, tag = 'smem constant byte address 0x4 - core index']
  #allocation1 [shape = 'u32[72,128]{1,0:T(1,128)}', space=vmem, size = 0x9000, scoped, tag = 'internal scratch']
  %s0 = inlined_call_operand.vmem [shape: f32[8,4], index: 0, kind: input, shape index: {}]
  %s1 = inlined_call_operand.vmem [shape: f32[8,2], index: 1, kind: input, shape index: {}]
  %s2 = inlined_call_operand.vmem [shape: f32[4,64], index: 2, kind: input, shape index: {}]
  %s3 = inlined_call_operand.vmem [shape: f32[2,64], index: 3, kind: input, shape index: {}]
  %s4 = inlined_call_operand.vmem [shape: f32[1,64], index: 4, kind: input, shape index: {}]
  %s5 = inlined_call_operand.vmem [shape: f32[64,64], index: 5, kind: input, shape index: {}]
  %s6 = inlined_call_operand.vmem [shape: f32[1,64], index: 6, kind: input, shape index: {}]
  %s7 = inlined_call_operand.vmem [shape: f32[64,4], index: 7, kind: input, shape index: {}]
  %s8 = inlined_call_operand.vmem [shape: f32[1,4], index: 8, kind: input, shape index: {}]
  %s9 = inlined_call_operand.vmem [shape: f32[8,4], index: 9, kind: output, shape index: {}]
  %s10 = sld [smem:[#allocation0]]
  $region46: #{transition_model_forward.1} parent=0
    _
  %s12 = ssub.s32 1, %s10
  %s13 = scalar_select 0, %s12, %s10
  // Predicated region
  $region2: #{transition_model_forward.1} parent=0 // pred_check
    _
  $region3: #{transition_model_forward.1} parent=0 // pred_check_branch
    %15 = sbr.rel (0) target = $region5
  $region4: #{transition_model_forward.1} parent=0 // pred_region
    _
  $region5: #{transition_model_forward.1} parent=0 // pred_fallthru
    _
  // Predicated region
  $region6: #{transition_model_forward.1} parent=0 // pred_check
    _
  $region7: #{transition_model_forward.1} parent=0 // pred_check_branch
    %17 = sbr.rel (0) target = $region9
  $region8: #{transition_model_forward.1} parent=0 // pred_region
    _
  $region9: #{transition_model_forward.1} parent=0 // pred_fallthru
    _
  // Predicated region
  $region10: #{transition_model_forward.1} parent=0 // pred_check
    _
  $region11: #{transition_model_forward.1} parent=0 // pred_check_branch
    %19 = sbr.rel (0) target = $region13
  $region12: #{transition_model_forward.1} parent=0 // pred_region
    _
  $region13: #{transition_model_forward.1} parent=0 // pred_fallthru
    _
  // Predicated region
  $region14: #{transition_model_forward.1} parent=0 // pred_check
    _
  $region15: #{transition_model_forward.1} parent=0 // pred_check_branch
    %21 = sbr.rel (0) target = $region17
  $region16: #{transition_model_forward.1} parent=0 // pred_region
    _
  $region17: #{transition_model_forward.1} parent=0 // pred_fallthru
    _
  // Predicated region
  $region18: #{transition_model_forward.1} parent=0 // pred_check
    _
  $region19: #{transition_model_forward.1} parent=0 // pred_check_branch
    %23 = sbr.rel (0) target = $region21
  $region20: #{transition_model_forward.1} parent=0 // pred_region
    _
  $region21: #{transition_model_forward.1} parent=0 // pred_fallthru
    _
  // Predicated region
  $region22: #{transition_model_forward.1} parent=0 // pred_check
    _
  $region23: #{transition_model_forward.1} parent=0 // pred_check_branch
    %25 = sbr.rel (0) target = $region25
  $region24: #{transition_model_forward.1} parent=0 // pred_region
    _
  $region25: #{transition_model_forward.1} parent=0 // pred_fallthru
    _
  // Predicated region
  $region26: #{transition_model_forward.1} parent=0 // pred_check
    _
  $region27: #{transition_model_forward.1} parent=0 // pred_check_branch
    %27 = sbr.rel (0) target = $region29
  $region28: #{transition_model_forward.1} parent=0 // pred_region
    _
  $region29: #{transition_model_forward.1} parent=0 // pred_fallthru
    _
  // Predicated region
  $region30: #{transition_model_forward.1} parent=0 // pred_check
    _
  $region31: #{transition_model_forward.1} parent=0 // pred_check_branch
    %29 = sbr.rel (0) target = $region33
  $region32: #{transition_model_forward.1} parent=0 // pred_region
    _
  $region33: #{transition_model_forward.1} parent=0 // pred_fallthru
    _
  // Predicated region
  $region34: #{transition_model_forward.1} parent=0 // pred_check
    _
  $region35: #{transition_model_forward.1} parent=0 // pred_check_branch
    %31 = sbr.rel (0) target = $region37
  $region36: #{transition_model_forward.1} parent=0 // pred_region
    _
  $region37: #{transition_model_forward.1} parent=0 // pred_fallthru
    _
  %v32 = vld [vmem:[%s0] sm:$0xff]
  %v33 = vld [vmem:[%s1] sm:$0xff]
  %v34 = vld [vmem:[%s2] sm:$0xf]
  %v35 = vld [vmem:[%s3] sm:$0x3]
  %vm36 = vcmask 15360
  %v38 = vsel %vm36, %v33, 0
  %vm40 = vcmask 1041408
  %v42 = vsel %vm40, %v35, 0
  %44 = vmatpush.msra.mxu0 0.0
  %45 = vmatpush.msra.mxu0 0.0
  %46 = vmatpush.msra.mxu0 0.0
  %47 = vmatpush.msra.mxu0 0.0
  %48 = vmatpush.msra.mxu0 0.0
  %49 = vmatpush.msra.mxu0 0.0
  %50 = vmatpush.msra.mxu0 0.0
  %51 = vmatpush.msra.mxu0 0.0
  %52 = vmatpush.msra.mxu0 0.0
  %53 = vmatpush.msra.mxu0 0.0
  %54 = vmatpush.msra.mxu0 0.0
  %55 = vmatpush.msra.mxu0 0.0
  %56 = vmatpush.msra.mxu0 0.0
  %57 = vmatpush.msra.mxu0 0.0
  %58 = vmatpush.msra.mxu0 0.0
  %59 = vmatpush.msra.mxu0 %v42
  %60 = vmatmul.f32.gmra.mxu0 %v38
  %v61 = vpop.f32.mrf.mxu0
  %v62 = vadd.f32 0.0, %v61
  %63 = vdwg.mxu0
  %vm64 = vcmask 31744
  %v66 = vsel %vm64, %v32, 0
  %vm68 = vcmask 1043456
  %v70 = vsel %vm68, %v34, 0
  %72 = vmatpush.msra.mxu0 0.0
  %73 = vmatpush.msra.mxu0 0.0
  %74 = vmatpush.msra.mxu0 0.0
  %75 = vmatpush.msra.mxu0 0.0
  %76 = vmatpush.msra.mxu0 0.0
  %77 = vmatpush.msra.mxu0 0.0
  %78 = vmatpush.msra.mxu0 0.0
  %79 = vmatpush.msra.mxu0 0.0
  %80 = vmatpush.msra.mxu0 0.0
  %81 = vmatpush.msra.mxu0 0.0
  %82 = vmatpush.msra.mxu0 0.0
  %83 = vmatpush.msra.mxu0 0.0
  %84 = vmatpush.msra.mxu0 0.0
  %85 = vmatpush.msra.mxu0 0.0
  %86 = vmatpush.msra.mxu0 0.0
  %87 = vmatpush.msra.mxu0 %v70
  %88 = vmatmul.f32.gmra.mxu0 %v66
  %v89 = vpop.f32.mrf.mxu0
  %v90 = vadd.f32 %v62, %v89
  %91 = vdwg.mxu0
  %v92 = vld [vmem:[%s4] sm:$0x1]
  %v94 = vperm.slane %v92, 0
  %v96 = vadd.f32 %v90, %v94
  %v97 = vmax.f32 %v96, 0.0
  %v98 = vld [vmem:[%s5] sm:$0xff]
  %v99 = vld [vmem:[%s5 + $0x8] sm:$0xff]
  %v100 = vld [vmem:[%s5 + $0x10] sm:$0xff]
  %v101 = vld [vmem:[%s5 + $0x18] sm:$0xff]
  %v102 = vld [vmem:[%s5 + $0x20] sm:$0xff]
  %v103 = vld [vmem:[%s5 + $0x28] sm:$0xff]
  %v104 = vld [vmem:[%s5 + $0x30] sm:$0xff]
  %v105 = vld [vmem:[%s5 + $0x38] sm:$0xff]
  %v106 = vld [vmem:[%s6] sm:$0x1]
  %v108 = vperm.slane %v106, 0
  %vm110 = vcmask 523264
  %v112 = vsel %vm110, %v97, 0
  %114 = vmatpush.msra.mxu0 0.0
  %115 = vmatpush.msra.mxu0 0.0
  %116 = vmatpush.msra.mxu0 0.0
  %117 = vmatpush.msra.mxu0 0.0
  %118 = vmatpush.msra.mxu0 0.0
  %119 = vmatpush.msra.mxu0 0.0
  %120 = vmatpush.msra.mxu0 0.0
  %121 = vmatpush.msra.mxu0 0.0
  %122 = vmatpush.msra.mxu0 %v105
  %123 = vmatpush.msra.mxu0 %v104
  %124 = vmatpush.msra.mxu0 %v103
  %125 = vmatpush.msra.mxu0 %v102
  %126 = vmatpush.msra.mxu0 %v101
  %127 = vmatpush.msra.mxu0 %v100
  %128 = vmatpush.msra.mxu0 %v99
  %129 = vmatpush.msra.mxu0 %v98
  %130 = vmatmul.f32.gmra.mxu0 %v112
  %v131 = vpop.f32.mrf.mxu0
  %v132 = vadd.f32 %v108, %v131
  %133 = vdwg.mxu0
  %v134 = vmax.f32 %v132, 0.0
  %v135 = vld [vmem:[%s7] sm:$0xff]
  %v136 = vld [vmem:[%s7 + $0x8] sm:$0xff]
  %v137 = vld [vmem:[%s7 + $0x10] sm:$0xff]
  %v138 = vld [vmem:[%s7 + $0x18] sm:$0xff]
  %v139 = vld [vmem:[%s7 + $0x20] sm:$0xff]
  %v140 = vld [vmem:[%s7 + $0x28] sm:$0xff]
  %v141 = vld [vmem:[%s7 + $0x30] sm:$0xff]
  %v142 = vld [vmem:[%s7 + $0x38] sm:$0xff]
  %v143 = vld [vmem:[%s8] sm:$0x1]
  %v145 = vperm.slane %v143, 0
  %v148 = vsel %vm110, %v134, 0
  %150 = vmatpush.msra.mxu0 0.0
  %151 = vmatpush.msra.mxu0 0.0
  %152 = vmatpush.msra.mxu0 0.0
  %153 = vmatpush.msra.mxu0 0.0
  %154 = vmatpush.msra.mxu0 0.0
  %155 = vmatpush.msra.mxu0 0.0
  %156 = vmatpush.msra.mxu0 0.0
  %157 = vmatpush.msra.mxu0 0.0
  %158 = vmatpush.msra.mxu0 %v142
  %159 = vmatpush.msra.mxu0 %v141
  %160 = vmatpush.msra.mxu0 %v140
  %161 = vmatpush.msra.mxu0 %v139
  %162 = vmatpush.msra.mxu0 %v138
  %163 = vmatpush.msra.mxu0 %v137
  %164 = vmatpush.msra.mxu0 %v136
  %165 = vmatpush.msra.mxu0 %v135
  %166 = vmatmul.f32.gmra.mxu0 %v148
  %v167 = vpop.f32.mrf.mxu0
  %v168 = vadd.f32 %v145, %v167
  %169 = vdwg.mxu0
  %170 = vst.msk [vmem:[%s9] sm:$0xff] %vm64, %v168
  // Predicated region
  $region38: #{transition_model_forward.1} parent=0 // pred_check
    _
  $region39: #{transition_model_forward.1} parent=0 // pred_check_branch
    %172 = sbr.rel (0) target = $region41
  $region40: #{transition_model_forward.1} parent=0 // pred_region
    _
  $region41: #{transition_model_forward.1} parent=0 // pred_fallthru
    _
  // Predicated region
  $region42: #{transition_model_forward.1} parent=0 // pred_check
    _
  $region43: #{transition_model_forward.1} parent=0 // pred_check_branch
    %174 = sbr.rel (0) target = $region45
  $region44: #{transition_model_forward.1} parent=0 // pred_region
    _
  $region45: #{transition_model_forward.1} parent=0 // pred_fallthru
    _

</llo_original>
